<compile_context>
chip_gen: v5e
topology: v5e:2x2
jax: 0.10.0
libtpu: 0.0.40
codegen_flags: <defaults>
</compile_context>

<pallas_src>
import functools

import jax
import jax.numpy as jnp
from jax.experimental import pallas as pl
from jax.experimental.pallas import tpu as pltpu


# ---------------- Pass 1: per-channel sum / sum-of-squares ----------------
def _stats_kernel(x_ref, sum_ref, sq_ref):
    # x_ref: (1, TC, HW) block of the (N, C, HW) input; sum/sq: (TC, 1) f32
    n = pl.program_id(1)

    @pl.when(n == 0)
    def _():
        sum_ref[...] = jnp.zeros_like(sum_ref)
        sq_ref[...] = jnp.zeros_like(sq_ref)

    x = x_ref[0].astype(jnp.float32)                       # (TC, HW)
    sum_ref[...] += jnp.sum(x, axis=1, keepdims=True)      # (TC, 1)
    sq_ref[...] += jnp.sum(x * x, axis=1, keepdims=True)   # (TC, 1)


# ---------------- Pass 2: normalize + affine, NCHW-native ----------------
def _norm_kernel(x_ref, scale_ref, shift_ref, o_ref):
    x = x_ref[...].astype(jnp.float32)                     # (1, TC, HW)
    scale = scale_ref[...][None, :, :]                     # (1, TC, 1)
    shift = shift_ref[...][None, :, :]                     # (1, TC, 1)
    o_ref[...] = (x * scale + shift).astype(o_ref.dtype)


def _pick_channel_tile(C, HW, itemsize, max_block_bytes=2 << 20):
    """Largest multiple of 8 dividing C whose x-block stays under the budget."""
    if C % 8 != 0:
        return C  # full-array exception for small / odd channel counts
    tc = 8
    for cand in range(8, C + 1, 8):
        if C % cand == 0 and cand * HW * itemsize <= max_block_bytes:
            tc = cand
    return tc


def switchable_batchnorm2d(x_nchw, gamma, beta, *, eps=1e-5):
    """Training-mode BatchNorm2d (batch stats + affine) via two Pallas passes."""
    N, C, H, W = x_nchw.shape
    HW = H * W
    count = N * HW
    itemsize = jnp.dtype(x_nchw.dtype).itemsize

    x3d = x_nchw.reshape(N, C, HW)          # free reshape, no HBM transpose
    TC = _pick_channel_tile(C, HW, itemsize)
    c_tiles = C // TC

    # ---- Pass 1: per-channel sums over (N, H, W) ----
    sums, sqs = pl.pallas_call(
        _stats_kernel,
        out_shape=(
            jax.ShapeDtypeStruct((C, 1), jnp.float32),
            jax.ShapeDtypeStruct((C, 1), jnp.float32),
        ),
        grid=(c_tiles, N),
        in_specs=[pl.BlockSpec((1, TC, HW), lambda c, n: (n, c, 0))],
        out_specs=(
            pl.BlockSpec((TC, 1), lambda c, n: (c, 0)),
            pl.BlockSpec((TC, 1), lambda c, n: (c, 0)),
        ),
        compiler_params=pltpu.CompilerParams(
            dimension_semantics=("parallel", "arbitrary")),
        cost_estimate=pl.CostEstimate(
            flops=3 * N * C * HW,
            transcendentals=0,
            bytes_accessed=N * C * HW * itemsize + 2 * C * 4),
    )(x3d)

    # ---- Tiny O(C) stats finalization in plain JAX (f32 accumulation) ----
    inv_count = jnp.float32(1.0 / count)
    mean = sums * inv_count                                  # (C, 1)
    var = jnp.maximum(sqs * inv_count - mean * mean, 0.0)    # biased variance
    inv_std = jax.lax.rsqrt(var + jnp.float32(eps))
    g2d = gamma.reshape(C, 1).astype(jnp.float32)
    b2d = beta.reshape(C, 1).astype(jnp.float32)
    scale = g2d * inv_std                                    # (C, 1)
    shift = b2d - mean * scale                               # (C, 1)

    # ---- Pass 2: y = x * scale[c] + shift[c], written NCHW-natively ----
    out3d = pl.pallas_call(
        _norm_kernel,
        out_shape=jax.ShapeDtypeStruct((N, C, HW), x_nchw.dtype),
        grid=(c_tiles, N),
        in_specs=[
            pl.BlockSpec((1, TC, HW), lambda c, n: (n, c, 0)),
            pl.BlockSpec((TC, 1), lambda c, n: (c, 0)),
            pl.BlockSpec((TC, 1), lambda c, n: (c, 0)),
        ],
        out_specs=pl.BlockSpec((1, TC, HW), lambda c, n: (n, c, 0)),
        compiler_params=pltpu.CompilerParams(
            dimension_semantics=("parallel", "parallel")),
        cost_estimate=pl.CostEstimate(
            flops=2 * N * C * HW,
            transcendentals=0,
            bytes_accessed=2 * N * C * HW * itemsize + 2 * C * 4),
    )(x3d, scale, shift)

    return out3d.reshape(N, C, H, W)


class SwitchableBatchNorm2dPallas:
    """Mirror of the PyTorch module: one BN parameter set per width."""

    def __init__(self, num_features_list, key, out_choose_list=None):
        self.num_features_list = num_features_list
        self.num_features = max(num_features_list)
        self.out_choose_list = (
            [i + 1 for i in range(len(num_features_list))]
            if out_choose_list is None
            else out_choose_list
        )
        self.out_choice = max(self.out_choose_list)
        # TODO(synk): running_mean / running_var (momentum update, unbiased var)
        # are not materialized; only the training-mode forward output is reproduced.
        self.params = []
        for nf in num_features_list:
            key, k1, k2 = jax.random.split(key, 3)
            gamma = 1.0 + 0.1 * jax.random.normal(k1, (nf,), dtype=jnp.float32)
            beta = 0.1 * jax.random.normal(k2, (nf,), dtype=jnp.float32)
            self.params.append((gamma, beta))

    def __call__(self, x):
        idx = self.out_choose_list.index(self.out_choice)
        gamma, beta = self.params[idx]
        assert x.shape[1] == self.num_features_list[idx]
        return switchable_batchnorm2d(x, gamma, beta)


def _reference_bn(x, gamma, beta, eps=1e-5):
    mean = jnp.mean(x, axis=(0, 2, 3), keepdims=True)
    var = jnp.mean((x - mean) ** 2, axis=(0, 2, 3), keepdims=True)
    return (x - mean) / jnp.sqrt(var + eps) * gamma[None, :, None, None] + beta[
        None, :, None, None
    ]


if __name__ == "__main__":
    key = jax.random.PRNGKey(0)
    key, kx, kp = jax.random.split(key, 3)

    # Small shapes consistent with the module: batch=2, channels=4, spatial=16.
    N, C, H, W = 2, 4, 16, 16
    x = jax.random.normal(kx, (N, C, H, W), dtype=jnp.float32)

    # num_features_list = [2, 4]; default out_choice selects the last (4-channel)
    # BN branch, matching the 4-channel input.
    module = SwitchableBatchNorm2dPallas([2, 4], key=kp)

    y = module(x)
    y = jax.block_until_ready(y)

    # Correctness check against a pure-JAX training-mode BatchNorm2d reference.
    idx = module.out_choose_list.index(module.out_choice)
    gamma, beta = module.params[idx]
    y_ref = _reference_bn(x, gamma, beta)
    assert y.shape == x.shape and y.dtype == x.dtype
    assert jnp.allclose(y, y_ref, atol=1e-4, rtol=1e-4)

    print("KERNEL_OK")
</pallas_src>

<mosaic_0001>
module attributes {stable_mosaic.version = 11 : i64} {
  func.func @_stats_kernel(%arg0: i32, %arg1: i32, %arg2: memref<1x4x256xf32, #tpu.memory_space<vmem>>, %arg3: memref<4x1xf32, #tpu.memory_space<vmem>>, %arg4: memref<4x1xf32, #tpu.memory_space<vmem>>) attributes {dimension_semantics = [#tpu.dimension_semantics<parallel>, #tpu.dimension_semantics<arbitrary>], iteration_bounds = array<i64: 1, 2>, scalar_prefetch = 0 : i64, scratch_operands = 0 : i64, tpu.core_type = #tpu.core_type<tc>, window_params = [{transform_indices = @transform_0, window_bounds = array<i64: 1, 4, 256>}, {transform_indices = @transform_1, window_bounds = array<i64: 4, 1>}, {transform_indices = @transform_2, window_bounds = array<i64: 4, 1>}]} {
    %c0_i32 = arith.constant 0 : i32
    %0 = arith.cmpi eq, %arg1, %c0_i32 : i32
    %1 = arith.extui %0 : i1 to i32
    %c0_i32_0 = arith.constant 0 : i32
    %2 = arith.cmpi ne, %1, %c0_i32_0 : i32
    scf.if %2 {
      %cst_12 = arith.constant 0.000000e+00 : f32
      %16 = vector.broadcast %cst_12 : f32 to vector<4x1xf32>
      %c0_13 = arith.constant 0 : index
      %c0_14 = arith.constant 0 : index
      %17 = vector.load %arg3[%c0_13, %c0_14] : memref<4x1xf32, #tpu.memory_space<vmem>>, vector<4x1xf32>
      tpu.vector_store %arg3[%c0_13, %c0_14], %16 {strides = array<i32>} : memref<4x1xf32, #tpu.memory_space<vmem>>, vector<4x1xf32>,
      %cst_15 = arith.constant 0.000000e+00 : f32
      %18 = vector.broadcast %cst_15 : f32 to vector<4x1xf32>
      %c0_16 = arith.constant 0 : index
      %c0_17 = arith.constant 0 : index
      %19 = vector.load %arg4[%c0_16, %c0_17] : memref<4x1xf32, #tpu.memory_space<vmem>>, vector<4x1xf32>
      tpu.vector_store %arg4[%c0_16, %c0_17], %18 {strides = array<i32>} : memref<4x1xf32, #tpu.memory_space<vmem>>, vector<4x1xf32>,
    } else {
    }
    %c0 = arith.constant 0 : index
    %c0_1 = arith.constant 0 : index
    %c0_2 = arith.constant 0 : index
    %3 = vector.load %arg2[%c0, %c0_1, %c0_2] : memref<1x4x256xf32, #tpu.memory_space<vmem>>, vector<1x4x256xf32>
    %4 = vector.shape_cast %3 : vector<1x4x256xf32> to vector<4x256xf32>
    %c0_3 = arith.constant 0 : index
    %c0_4 = arith.constant 0 : index
    %5 = vector.load %arg3[%c0_3, %c0_4] : memref<4x1xf32, #tpu.memory_space<vmem>>, vector<4x1xf32>
    %cst = arith.constant dense<0.000000e+00> : vector<4xf32>
    %6 = vector.multi_reduction <add>, %4, %cst [1] : vector<4x256xf32> to vector<4xf32>
    %7 = vector.shape_cast %6 : vector<4xf32> to vector<4x1xf32>
    %8 = arith.addf %5, %7 : vector<4x1xf32>
    %c0_5 = arith.constant 0 : index
    %c0_6 = arith.constant 0 : index
    %9 = vector.load %arg3[%c0_5, %c0_6] : memref<4x1xf32, #tpu.memory_space<vmem>>, vector<4x1xf32>
    tpu.vector_store %arg3[%c0_5, %c0_6], %8 {strides = array<i32>} : memref<4x1xf32, #tpu.memory_space<vmem>>, vector<4x1xf32>,
    %c0_7 = arith.constant 0 : index
    %c0_8 = arith.constant 0 : index
    %10 = vector.load %arg4[%c0_7, %c0_8] : memref<4x1xf32, #tpu.memory_space<vmem>>, vector<4x1xf32>
    %11 = arith.mulf %4, %4 : vector<4x256xf32>
    %cst_9 = arith.constant dense<0.000000e+00> : vector<4xf32>
    %12 = vector.multi_reduction <add>, %11, %cst_9 [1] : vector<4x256xf32> to vector<4xf32>
    %13 = vector.shape_cast %12 : vector<4xf32> to vector<4x1xf32>
    %14 = arith.addf %10, %13 : vector<4x1xf32>
    %c0_10 = arith.constant 0 : index
    %c0_11 = arith.constant 0 : index
    %15 = vector.load %arg4[%c0_10, %c0_11] : memref<4x1xf32, #tpu.memory_space<vmem>>, vector<4x1xf32>
    tpu.vector_store %arg4[%c0_10, %c0_11], %14 {strides = array<i32>} : memref<4x1xf32, #tpu.memory_space<vmem>>, vector<4x1xf32>,
    return
  }
  func.func @transform_0(%arg0: i32, %arg1: i32) -> (i32, i32, i32) {
    %c0_i32 = arith.constant 0 : i32
    %c0_i32_0 = arith.constant 0 : i32
    return %arg1, %arg0, %c0_i32 : i32, i32, i32
  }
  func.func @transform_1(%arg0: i32, %arg1: i32) -> (i32, i32) {
    %c0_i32 = arith.constant 0 : i32
    %c0_i32_0 = arith.constant 0 : i32
    return %arg0, %c0_i32 : i32, i32
  }
  func.func @transform_2(%arg0: i32, %arg1: i32) -> (i32, i32) {
    %c0_i32 = arith.constant 0 : i32
    %c0_i32_0 = arith.constant 0 : i32
    return %arg0, %c0_i32 : i32, i32
  }
}

</mosaic_0001>

<llo_original>
// kernel: tpu_custom_call.1
$region0: #{tpu_custom_call.1}
  #allocation0 [shape = 'u32[]', space=smem, size = 0x4, offset = 0x4, fixed_abs, tag = 'smem constant byte address 0x4 - core index']
  #allocation1 [shape = 'u32[72,128]{1,0:T(1,128)}', space=vmem, size = 0x9000, scoped, tag = 'internal scratch']
  %s0 = inlined_call_operand.hbm [shape: f32[2,4,256], index: 0, kind: input, shape index: {}]
  %s1 = inlined_call_operand.vmem [shape: f32[4,1], index: 1, kind: output, shape index: {0}]
  %s2 = inlined_call_operand.vmem [shape: f32[4,1], index: 2, kind: output, shape index: {1}]
  %3 = xla_tuple %s1, %s2
  %s4 = sld [smem:[#allocation0]]
  $region53: #{tpu_custom_call.1} parent=0
    _
  %s6 = ssub.s32 1, %s4
  %s7 = scalar_select 0, %s6, %s4
  $region1: #{tpu_custom_call.1} parent=0
    #allocation2 [shape = 'u8[8192]{0}', space=vmem, size = 0x2000, scoped, tag = 'input window, operand 0']
    #allocation3 [shape = 's32[2]{0}', space=sflag, size = 0x8, scoped, tag = 'scoped memory for tpu_custom_call.1']
    %8 = vsyncpa [#allocation3], 0
    %s9 = scalar_lea.sflag [#allocation3], 1
    %10 = vsyncpa %s9, 0
    loop: start=0, step=1, limit=4
    $region2: #{tpu_custom_call.1} parent=1 // loop_pre_header
      _
    $region3: #{tpu_custom_call.1} parent=1 // loop_header
      %s12 = sphi 0, %s16
      %p13 = scmp.ge.s32.totalorder %s12, 4
      %s19 = sphi 0, %s31
      %s20 = sphi 0, %s27
      %s21 = sphi 0, %s19
      %s22 = sphi 0, %s20
      %s23 = sphi 0, %s21
      %s24 = sphi 0, %s22
      %s36 = sphi 0, %s38
      %s39 = sphi 0, %s36
      %s40 = sphi 0, %s39
      %s56 = sphi 0, %s40
      %s62 = sphi 0, %s64
      %s65 = sphi 0, %s62
      %s66 = sphi 0, %s65
      %s82 = sphi 0, %s66
      %s88 = sphi 0, %s90
      %s91 = sphi 0, %s88
      %s92 = sphi 0, %s91
      %s108 = sphi 0, %s92
    $region4: #{tpu_custom_call.1} parent=1 // loop_header_branch
      %15 = sbr.rel (%p13) target = $region8
    $region5: #{tpu_custom_call.1} parent=1 // loop_body
      %s17 = ssub.s32 %s12, 1
      %s18 = ssub.s32 %s12, 2
      %s25 = sadd.s32 1, %s20
      %p26 = scmp.ge.s32.totalorder %s25, 2
      %s27 = scalar_select %p26, 0, %s25
      %s28 = sadd.s32 1, %s19
      %s29 = scalar_select %p26, %s28, %s19
      %p30 = scmp.ge.s32.totalorder %s29, 1
      %s31 = scalar_select %p30, 0, %s29
      %s32 = ssub.s32 %s20, %s27
      %s33 = ssub.s32 %s19, %s31
      %s34 = sor.u32 %s32, %s33
      %p35 = scmp.eq.s32.totalorder %s34, 0
      %s37 = sadd.s32 %s36, 1
      %s38 = scalar_select %p35, %s36, %s37
      %p41 = pneg %p35
      %p42 = scmp.eq.s32.totalorder %s12, 1
      %p43 = por %p41, %p42
      %p44 = scmp.ne.s32.totalorder %s36, %s39
      %p45 = scmp.eq.s32.totalorder %s12, 0
      %p46 = por %p44, %p45
      %p47 = scmp.ne.s32.totalorder %s36, %s39
      %p48 = scmp.eq.s32.totalorder %s17, 1
      %p49 = por %p47, %p48
      %p50 = scmp.ne.s32.totalorder %s39, %s40
      %p51 = scmp.eq.s32.totalorder %s17, 0
      %p52 = por %p50, %p51
      %p53 = scmp.ne.s32.totalorder %s39, %s40
      %p54 = scmp.eq.s32.totalorder %s18, 1
      %p55 = por %p53, %p54
      %p57 = scmp.ne.s32.totalorder %s40, %s56
      %p58 = scmp.eq.s32.totalorder %s18, 0
      %p59 = por %p57, %p58
      %s60 = ssub.s32 %s19, %s31
      %p61 = scmp.eq.s32.totalorder %s60, 0
      %s63 = sadd.s32 %s62, 1
      %s64 = scalar_select %p61, %s62, %s63
      %p67 = pneg %p61
      %p68 = scmp.eq.s32.totalorder %s12, 1
      %p69 = por %p67, %p68
      %p70 = scmp.ne.s32.totalorder %s62, %s65
      %p71 = scmp.eq.s32.totalorder %s12, 0
      %p72 = por %p70, %p71
      %p73 = scmp.ne.s32.totalorder %s62, %s65
      %p74 = scmp.eq.s32.totalorder %s17, 1
      %p75 = por %p73, %p74
      %p76 = scmp.ne.s32.totalorder %s65, %s66
      %p77 = scmp.eq.s32.totalorder %s17, 0
      %p78 = por %p76, %p77
      %p79 = scmp.ne.s32.totalorder %s65, %s66
      %p80 = scmp.eq.s32.totalorder %s18, 1
      %p81 = por %p79, %p80
      %p83 = scmp.ne.s32.totalorder %s66, %s82
      %p84 = scmp.eq.s32.totalorder %s18, 0
      %p85 = por %p83, %p84
      %s86 = ssub.s32 %s19, %s31
      %p87 = scmp.eq.s32.totalorder %s86, 0
      %s89 = sadd.s32 %s88, 1
      %s90 = scalar_select %p87, %s88, %s89
      %p93 = pneg %p87
      %p94 = scmp.eq.s32.totalorder %s12, 1
      %p95 = por %p93, %p94
      %p96 = scmp.ne.s32.totalorder %s88, %s91
      %p97 = scmp.eq.s32.totalorder %s12, 0
      %p98 = por %p96, %p97
      %p99 = scmp.ne.s32.totalorder %s88, %s91
      %p100 = scmp.eq.s32.totalorder %s17, 1
      %p101 = por %p99, %p100
      %p102 = scmp.ne.s32.totalorder %s91, %s92
      %p103 = scmp.eq.s32.totalorder %s17, 0
      %p104 = por %p102, %p103
      %p105 = scmp.ne.s32.totalorder %s91, %s92
      %p106 = scmp.eq.s32.totalorder %s18, 1
      %p107 = por %p105, %p106
      %p109 = scmp.ne.s32.totalorder %s92, %s108
      %p110 = scmp.eq.s32.totalorder %s18, 0
      %p111 = por %p109, %p110
      %p112 = scmp.le.s32.totalorder 1, %s12
      %p113 = scmp.lt.s32.totalorder %s12, 3
      %p114 = pnand %p112, %p113
      %p115 = pneg %p114
      // Predicated region
      $region9: #{tpu_custom_call.1} parent=5 // pred_check
        _
      $region10: #{tpu_custom_call.1} parent=5 // pred_check_branch
        %117 = sbr.rel (%p114) target = $region12
      $region11: #{tpu_custom_call.1} parent=5 // pred_region
        %s118 = ssub.s32 %s12, 1
      $region12: #{tpu_custom_call.1} parent=5 // pred_fallthru
        _
      %p119 = scmp.lt.s32.totalorder %s12, 2
      // Predicated region
      $region13: #{tpu_custom_call.1} parent=5 // pred_check
        %p120 = pneg %p119
      $region14: #{tpu_custom_call.1} parent=5 // pred_check_branch
        %122 = sbr.rel (%p120) target = $region16
      $region15: #{tpu_custom_call.1} parent=5 // pred_region
        // Predicated region
        $region17: #{tpu_custom_call.1} parent=15 // pred_check
          %p123 = pneg %p46
        $region18: #{tpu_custom_call.1} parent=15 // pred_check_branch
          %125 = sbr.rel (%p123) target = $region20
        $region19: #{tpu_custom_call.1} parent=15 // pred_region
          %s126 = sand.u32 %s36, 1
          %s127 = scalar_lea.sflag [#allocation3], %s126
          %s128 = sand.u32 %s36, 1
          %s129 = smul.addr %s128, 8
          %s130 = scalar_lea.vmem [#allocation2], %s129
          %132 = vsyncadd %s127, 0
          %s133 = smul.addr %s19, 2
          %s134 = smul.addr %s20, 2
          %s135 = sadd.s32 %s133, %s134
          %s136 = smul.addr %s135, 4
          %s137 = scalar_lea.hbm %s0, %s136
          %s139 = sshll.u32 %s137, 4
          %s140 = int_to_ptr.hbm [resolvable:$true] %s139
          %s141 = sshll.u32 %s130, 4
          %s142 = int_to_ptr.vmem [resolvable:$true] %s141
          %144 = dma.hbm_to_vmem [thread:$0]  %s140, 128, %s142, %s127
        $region20: #{tpu_custom_call.1} parent=15 // pred_fallthru
          _
      $region16: #{tpu_custom_call.1} parent=5 // pred_fallthru
        _
      %p145 = scmp.le.s32.totalorder 1, %s12
      %p146 = scmp.lt.s32.totalorder %s12, 3
      %p147 = pnand %p145, %p146
      %p148 = pneg %p147
      // Predicated region
      $region21: #{tpu_custom_call.1} parent=5 // pred_check
        _
      $region22: #{tpu_custom_call.1} parent=5 // pred_check_branch
        %150 = sbr.rel (%p147) target = $region24
      $region23: #{tpu_custom_call.1} parent=5 // pred_region
        %s151 = ssub.s32 %s12, 1
        %s152 = sand.u32 %s39, 1
        %s153 = scalar_lea.sflag [#allocation3], %s152
        %s154 = sand.u32 %s39, 1
        %s155 = smul.addr %s154, 8
        %s156 = scalar_lea.vmem [#allocation2], %s155
        // Predicated region
        $region25: #{tpu_custom_call.1} parent=23 // pred_check
          %p157 = pneg %p52
        $region26: #{tpu_custom_call.1} parent=23 // pred_check_branch
          %159 = sbr.rel (%p157) target = $region28
        $region27: #{tpu_custom_call.1} parent=23 // pred_region
          %161 = dma.done %s153, 128
        $region28: #{tpu_custom_call.1} parent=23 // pred_fallthru
          _
        %s162 = sand.u32 %s39, 1
        %s163 = scalar_lea.sflag [#allocation3], %s162
        %s164 = sand.u32 %s39, 1
        %s165 = smul.addr %s164, 8
        %s166 = scalar_lea.vmem [#allocation2], %s165
        %p167 = pneg %p52
        %p168 = pneg %p49
        %p169 = pneg %p78
        %p170 = pneg %p75
        %p171 = scmp.lt.s32.totalorder %s21, 0
        %s172 = scalar_select %p171, %s21, 0
        %s173 = smul.addr %s172, 4
        %s174 = scalar_lea.vmem %s1, %s173
        %p175 = pneg %p104
        %p176 = pneg %p101
        %p177 = scmp.lt.s32.totalorder %s21, 0
        %s178 = scalar_select %p177, %s21, 0
        %s179 = smul.addr %s178, 4
        %s180 = scalar_lea.vmem %s2, %s179
        %p181 = scmp.lt.s32.totalorder %s21, 0
        %s182 = scalar_select %p181, %s21, 0
        %s183 = smul.addr %s182, 4
        %s184 = scalar_lea.vmem %s1, %s183
        %p185 = scmp.lt.s32.totalorder %s21, 0
        %s186 = scalar_select %p185, %s21, 0
        %s187 = smul.addr %s186, 4
        %s188 = scalar_lea.vmem %s2, %s187
        %p189 = scmp.eq.s32.totalorder %s22, 0
        // Predicated region
        $region29: #{tpu_custom_call.1} parent=23 // pred_check
          %p190 = pneg %p189
        $region30: #{tpu_custom_call.1} parent=23 // pred_check_branch
          %192 = sbr.rel (%p190) target = $region32
        $region31: #{tpu_custom_call.1} parent=23 // pred_region
          %vm193 = vcmask 3072
          %194 = vst.msk [vmem:[%s184] sm:$0xf] %vm193, 0.0
          %195 = vst.msk [vmem:[%s188] sm:$0xf] %vm193, 0.0
        $region32: #{tpu_custom_call.1} parent=23 // pred_fallthru
          _
        %v196 = vld [vmem:[%s156] sm:$0xff]
        %v197 = vld [vmem:[%s184] sm:$0xf]
        %199 = vst [vmem:[#allocation1] ss:$2 sm:$0xff] %v196
        %v200 = vld.sshfl [vmem:[#allocation1] sm:$0xff pattern:$0x75316420]
        %v201 = vld.sshfl [vmem:[#allocation1 + $0x8] sm:$0xff pattern:$0x75316420]
        %vm204 = vcmask 1043456
        %v205 = vsel %vm204, %v200, 0.0
        %v206 = vsel %vm204, %v201, 0.0
        %v207 = vadd.f32 %v205, %v206
        %208 = vadd.xlane.f32.xlu0 %v207
        %v209 = vpop.xlane.xlu0 %208
        %v210 = vadd.f32 %v197, %v209
        %vm211 = vcmask 3072
        %212 = vst.msk [vmem:[%s184] sm:$0xf] %vm211, %v210
        %v213 = vld [vmem:[%s188] sm:$0xf]
        %v214 = vmul.f32 %v196, %v196
        %216 = vst [vmem:[#allocation1] ss:$2 sm:$0xff] %v214
        %v217 = vld.sshfl [vmem:[#allocation1] sm:$0xff pattern:$0x75316420]
        %v218 = vld.sshfl [vmem:[#allocation1 + $0x8] sm:$0xff pattern:$0x75316420]
        %v221 = vsel %vm204, %v217, 0.0
        %v222 = vsel %vm204, %v218, 0.0
        %v223 = vadd.f32 %v221, %v222
        %224 = vadd.xlane.f32.xlu0 %v223
        %v225 = vpop.xlane.xlu0 %224
        %v226 = vadd.f32 %v213, %v225
        %227 = vst.msk [vmem:[%s188] sm:$0xf] %vm211, %v226
        %p228 = scmp.lt.s32.totalorder %s21, 0
        %s229 = scalar_select %p228, %s21, 0
        %s230 = smul.addr %s229, 4
        %s231 = scalar_lea.vmem %s1, %s230
        %p232 = scmp.lt.s32.totalorder %s21, 0
        %s233 = scalar_select %p232, %s21, 0
        %s234 = smul.addr %s233, 4
        %s235 = scalar_lea.vmem %s2, %s234
        // Predicated region
        $region33: #{tpu_custom_call.1} parent=23 // pred_check
          %p236 = pneg %p75
        $region34: #{tpu_custom_call.1} parent=23 // pred_check_branch
          %238 = sbr.rel (%p236) target = $region36
        $region35: #{tpu_custom_call.1} parent=23 // pred_region
          _
        $region36: #{tpu_custom_call.1} parent=23 // pred_fallthru
          _
        // Predicated region
        $region37: #{tpu_custom_call.1} parent=23 // pred_check
          %p239 = pneg %p101
        $region38: #{tpu_custom_call.1} parent=23 // pred_check_branch
          %241 = sbr.rel (%p239) target = $region40
        $region39: #{tpu_custom_call.1} parent=23 // pred_region
          _
        $region40: #{tpu_custom_call.1} parent=23 // pred_fallthru
          _
        // Predicated region
        $region41: #{tpu_custom_call.1} parent=23 // pred_check
          %p242 = pneg %p75
        $region42: #{tpu_custom_call.1} parent=23 // pred_check_branch
          %244 = sbr.rel (%p242) target = $region44
        $region43: #{tpu_custom_call.1} parent=23 // pred_region
          %p245 = scmp.lt.s32.totalorder %s21, 0
          %s246 = scalar_select %p245, %s21, 0
          %s247 = smul.addr %s246, 4
          %s248 = scalar_lea.vmem %s1, %s247
        $region44: #{tpu_custom_call.1} parent=23 // pred_fallthru
          _
        // Predicated region
        $region45: #{tpu_custom_call.1} parent=23 // pred_check
          %p249 = pneg %p101
        $region46: #{tpu_custom_call.1} parent=23 // pred_check_branch
          %251 = sbr.rel (%p249) target = $region48
        $region47: #{tpu_custom_call.1} parent=23 // pred_region
          %p252 = scmp.lt.s32.totalorder %s21, 0
          %s253 = scalar_select %p252, %s21, 0
          %s254 = smul.addr %s253, 4
          %s255 = scalar_lea.vmem %s2, %s254
        $region48: #{tpu_custom_call.1} parent=23 // pred_fallthru
          _
      $region24: #{tpu_custom_call.1} parent=5 // pred_fallthru
        _
      %p256 = scmp.le.s32.totalorder 2, %s12
      // Predicated region
      $region49: #{tpu_custom_call.1} parent=5 // pred_check
        %p257 = pneg %p256
      $region50: #{tpu_custom_call.1} parent=5 // pred_check_branch
        %259 = sbr.rel (%p257) target = $region52
      $region51: #{tpu_custom_call.1} parent=5 // pred_region
        %s260 = ssub.s32 %s12, 2
      $region52: #{tpu_custom_call.1} parent=5 // pred_fallthru
        _
    $region6: #{tpu_custom_call.1} parent=1 // loop_footer
      %s16 = sadd.s32 1, %s12
    $region7: #{tpu_custom_call.1} parent=1 // loop_footer_branch
      %11 = sbr.rel target = $region3
    $region8: #{tpu_custom_call.1} parent=1 // loop_exit
      _
    %261 = vsyncpa [#allocation3], 1
    %s262 = scalar_lea.sflag [#allocation3], 1
    %263 = vsyncpa %s262, 1

</llo_original>
